<compile_context>
chip_gen: v7x
topology: tpu7x:2x2x1
jax: 0.10.0
libtpu: 0.0.40
codegen_flags: <defaults>
</compile_context>

<pallas_src>
import jax
import jax.numpy as jnp
from jax import lax
from jax.experimental import pallas as pl
from jax.experimental.pallas import tpu as pltpu


def _round_up(n, m):
    return ((n + m - 1) // m) * m


def _vmem_capacity_bytes():
    # Per-TensorCore physical VMEM (v5e/v6e: 128 MiB, v7x: 64 MiB). Fallback is the smallest.
    try:
        return int(pltpu.get_tpu_info().vmem_capacity_bytes)
    except Exception:
        return 64 * 1024 * 1024


def _autoencoder_kernel(x_ref, we_ref, be_ref, wd_ref, bd_ref, enc_ref, dec_ref):
    # x_ref : (TB, input_dim)               batch tile (compute dtype, typically bf16)
    # we_ref: (compressed_dim, input_dim)   encoder weight, PyTorch (out, in) layout
    # be_ref: (1, compressed_dim)           f32
    # wd_ref: (input_dim, compressed_dim)   decoder weight, PyTorch (out, in) layout
    # bd_ref: (1, input_dim)                f32
    x = x_ref[...]

    # encoded = relu(x @ We^T + be): contract x axis 1 with We axis 1 (MXU handles the
    # transposed RHS natively); f32 accumulation, f32 bias + ReLU epilogue.
    enc = lax.dot_general(x, we_ref[...], (((1,), (1,)), ((), ())),
                          preferred_element_type=jnp.float32)
    enc = jnp.maximum(enc + be_ref[...], 0.0)
    enc_ref[...] = enc.astype(enc_ref.dtype)

    # decoded = relu(encoded @ Wd^T + bd): consumes the f32 latent directly (no HBM round trip).
    enc_mm = enc.astype(wd_ref.dtype)
    dec = lax.dot_general(enc_mm, wd_ref[...], (((1,), (1,)), ((), ())),
                          preferred_element_type=jnp.float32)
    dec = jnp.maximum(dec + bd_ref[...], 0.0)
    dec_ref[...] = dec.astype(dec_ref.dtype)


def state_autoencoder_forward(x, enc_w, enc_b, dec_w, dec_b, *,
                              block_b=512, compute_dtype=jnp.bfloat16):
    """x: (B, input_dim); enc_w: (compressed_dim, input_dim); dec_w: (input_dim, compressed_dim).

    Returns (encoded, decoded) matching PyTorch StateAutoEncoder.forward, in x.dtype.
    """
    B, input_dim = x.shape
    compressed_dim = enc_w.shape[0]
    assert enc_w.shape == (compressed_dim, input_dim)
    assert dec_w.shape == (input_dim, compressed_dim)
    assert enc_b.shape == (compressed_dim,)
    assert dec_b.shape == (input_dim,)

    out_dtype = x.dtype
    cdt = jnp.dtype(compute_dtype) if compute_dtype is not None else jnp.dtype(out_dtype)

    # Matmul operands in the (typically bf16) compute dtype; biases stay f32 for the epilogue.
    # Weights keep their PyTorch (out, in) layout -- no per-call transpose pass.
    x_in = x.astype(cdt)
    we = enc_w.astype(cdt)
    wd = dec_w.astype(cdt)
    be = enc_b.reshape(1, compressed_dim).astype(jnp.float32)
    bd = dec_b.reshape(1, input_dim).astype(jnp.float32)

    in_itemsize = cdt.itemsize
    out_itemsize = jnp.dtype(out_dtype).itemsize

    # ---- VMEM budget -> batch tile size -------------------------------------------------
    # Resident (single-buffered) weights + biases; per-batch-row cost of the double-buffered
    # x / encoded / decoded tiles.
    resident = in_itemsize * 2 * input_dim * compressed_dim + 4 * (input_dim + compressed_dim)
    per_row = 2 * (in_itemsize * input_dim + out_itemsize * (compressed_dim + input_dim))
    vmem_cap = _vmem_capacity_bytes()                       # per-TensorCore
    budget = min(int(0.8 * vmem_cap), 96 * 1024 * 1024)     # headroom below physical
    tile_budget = max(budget - resident - (2 << 20), 8 * per_row)
    tb = max(8, min(block_b, tile_budget // per_row) // 8 * 8)
    tb = min(tb, _round_up(B, 8))
    # v7x megacore: keep >= 2 batch tiles when B allows so "parallel" can use both TensorCores.
    if B > 8 and pl.cdiv(B, tb) < 2:
        tb = max(8, _round_up(pl.cdiv(B, 2), 8))
    grid = (pl.cdiv(B, tb),)                                # ragged last block masked by Pallas

    footprint = resident + tb * per_row
    vmem_limit = int(min(max(footprint + (4 << 20), 16 << 20),
                         max(vmem_cap - (4 << 20), footprint + (1 << 20))))

    # Advisory cost estimate (two matmuls: 2*M*N*K flops each).
    flops = 4 * B * input_dim * compressed_dim
    bytes_accessed = (
        in_itemsize * (B * input_dim + 2 * input_dim * compressed_dim)
        + 4 * (input_dim + compressed_dim)
        + out_itemsize * (B * compressed_dim + B * input_dim))

    def resident_spec(shape):
        # Constant index_map -> fetched once; single-buffered to halve its VMEM footprint.
        return pl.BlockSpec(shape, lambda i: (0, 0), pipeline_mode=pl.Buffered(1))

    encoded, decoded = pl.pallas_call(
        _autoencoder_kernel,
        out_shape=(
            jax.ShapeDtypeStruct((B, compressed_dim), out_dtype),
            jax.ShapeDtypeStruct((B, input_dim), out_dtype),
        ),
        grid=grid,
        in_specs=[
            pl.BlockSpec((tb, input_dim), lambda i: (i, 0)),   # x: batch-tiled, double-buffered
            resident_spec((compressed_dim, input_dim)),        # We: VMEM-resident
            resident_spec((1, compressed_dim)),                # be
            resident_spec((input_dim, compressed_dim)),        # Wd: VMEM-resident
            resident_spec((1, input_dim)),                     # bd
        ],
        out_specs=(
            # TODO(synk): for compressed_dim < 128 a batch-on-lanes (transposed) latent layout
            # would make this store lane-dense; tiny latents currently use masked stores.
            pl.BlockSpec((tb, compressed_dim), lambda i: (i, 0)),
            pl.BlockSpec((tb, input_dim), lambda i: (i, 0)),
        ),
        compiler_params=pltpu.CompilerParams(
            dimension_semantics=("parallel",),
            vmem_limit_bytes=vmem_limit,
        ),
        cost_estimate=pl.CostEstimate(flops=flops, transcendentals=0,
                                      bytes_accessed=bytes_accessed),
    )(x_in, we, be, wd, bd)

    return encoded, decoded


def _run_case(key, batch, input_dim, compressed_dim):
    k_x, k_ew, k_eb, k_dw, k_db = jax.random.split(key, 5)
    x = jax.random.normal(k_x, (batch, input_dim), dtype=jnp.float32)

    # Deterministic init mirroring nn.Linear's U(-1/sqrt(fan_in), 1/sqrt(fan_in)).
    e_bound = 1.0 / float(input_dim) ** 0.5
    d_bound = 1.0 / float(compressed_dim) ** 0.5
    enc_w = jax.random.uniform(k_ew, (compressed_dim, input_dim), jnp.float32,
                               minval=-e_bound, maxval=e_bound)
    enc_b = jax.random.uniform(k_eb, (compressed_dim,), jnp.float32,
                               minval=-e_bound, maxval=e_bound)
    dec_w = jax.random.uniform(k_dw, (input_dim, compressed_dim), jnp.float32,
                               minval=-d_bound, maxval=d_bound)
    dec_b = jax.random.uniform(k_db, (input_dim,), jnp.float32,
                               minval=-d_bound, maxval=d_bound)

    encoded, decoded = state_autoencoder_forward(x, enc_w, enc_b, dec_w, dec_b)
    jax.block_until_ready((encoded, decoded))

    # Pure-JAX reference (tolerance accommodates bf16 MXU passes used by both paths).
    enc_ref = jnp.maximum(x @ enc_w.T + enc_b, 0.0)
    dec_ref = jnp.maximum(enc_ref @ dec_w.T + dec_b, 0.0)
    assert encoded.shape == (batch, compressed_dim)
    assert decoded.shape == (batch, input_dim)
    assert encoded.dtype == x.dtype and decoded.dtype == x.dtype
    assert jnp.allclose(encoded, enc_ref, atol=1e-2, rtol=2e-2), "encoded mismatch"
    assert jnp.allclose(decoded, dec_ref, atol=1e-2, rtol=2e-2), "decoded mismatch"


if __name__ == "__main__":
    key = jax.random.PRNGKey(0)
    k1, k2 = jax.random.split(key)

    # Case 1: multi-tile batch grid (>=2 tiles for megacore), lane-dense feature dims.
    _run_case(k1, batch=256, input_dim=256, compressed_dim=128)
    # Case 2: tiny ragged batch (B=10, no wrapper pad; Pallas masks the partial last block)
    # and small feature dims.
    _run_case(k2, batch=10, input_dim=32, compressed_dim=16)

    print("KERNEL_OK")
</pallas_src>

<mosaic_0001>
module attributes {stable_mosaic.version = 11 : i64} {
  func.func @_autoencoder_kernel(%arg0: i32, %arg1: memref<128x256xbf16, #tpu.memory_space<vmem>>, %arg2: memref<128x256xbf16, #tpu.memory_space<vmem>>, %arg3: memref<1x128xf32, #tpu.memory_space<vmem>>, %arg4: memref<256x128xbf16, #tpu.memory_space<vmem>>, %arg5: memref<1x256xf32, #tpu.memory_space<vmem>>, %arg6: memref<128x128xf32, #tpu.memory_space<vmem>>, %arg7: memref<128x256xf32, #tpu.memory_space<vmem>>) attributes {dimension_semantics = [#tpu.dimension_semantics<parallel>], iteration_bounds = array<i64: 2>, scalar_prefetch = 0 : i64, scratch_operands = 0 : i64, tpu.core_type = #tpu.core_type<tc>, window_params = [{transform_indices = @transform_0, window_bounds = array<i64: 128, 256>}, {pipeline_mode = #tpu.pipeline_mode<synchronous>, transform_indices = @transform_1, window_bounds = array<i64: 128, 256>}, {pipeline_mode = #tpu.pipeline_mode<synchronous>, transform_indices = @transform_2, window_bounds = array<i64: 1, 128>}, {pipeline_mode = #tpu.pipeline_mode<synchronous>, transform_indices = @transform_3, window_bounds = array<i64: 256, 128>}, {pipeline_mode = #tpu.pipeline_mode<synchronous>, transform_indices = @transform_4, window_bounds = array<i64: 1, 256>}, {transform_indices = @transform_5, window_bounds = array<i64: 128, 128>}, {transform_indices = @transform_6, window_bounds = array<i64: 128, 256>}]} {
    %c0 = arith.constant 0 : index
    %c0_0 = arith.constant 0 : index
    %0 = vector.load %arg1[%c0, %c0_0] : memref<128x256xbf16, #tpu.memory_space<vmem>>, vector<128x256xbf16>
    %c0_1 = arith.constant 0 : index
    %c0_2 = arith.constant 0 : index
    %1 = vector.load %arg2[%c0_1, %c0_2] : memref<128x256xbf16, #tpu.memory_space<vmem>>, vector<128x256xbf16>
    %cst = arith.constant dense<0.000000e+00> : vector<128x128xf32>
    %2 = tpu.matmul %0, %1, %cst {dimension_numbers = #tpu.dot_dimension_numbers<[1], [1], [0], [0], [0, 0, 1, 0], [], []>} : vector<128x256xbf16>, vector<128x256xbf16>, vector<128x128xf32> -> vector<128x128xf32>
    %c0_3 = arith.constant 0 : index
    %c0_4 = arith.constant 0 : index
    %3 = vector.load %arg3[%c0_3, %c0_4] : memref<1x128xf32, #tpu.memory_space<vmem>>, vector<1x128xf32>
    %4 = vector.broadcast %3 : vector<1x128xf32> to vector<128x128xf32>
    %5 = arith.addf %2, %4 : vector<128x128xf32>
    %cst_5 = arith.constant 0.000000e+00 : f32
    %6 = vector.broadcast %cst_5 : f32 to vector<128x128xf32>
    %7 = arith.maximumf %5, %6 : vector<128x128xf32>
    %c0_6 = arith.constant 0 : index
    %c0_7 = arith.constant 0 : index
    %8 = vector.load %arg6[%c0_6, %c0_7] : memref<128x128xf32, #tpu.memory_space<vmem>>, vector<128x128xf32>
    tpu.vector_store %arg6[%c0_6, %c0_7], %7 {strides = array<i32>} : memref<128x128xf32, #tpu.memory_space<vmem>>, vector<128x128xf32>,
    %9 = arith.truncf %7 : vector<128x128xf32> to vector<128x128xbf16>
    %c0_8 = arith.constant 0 : index
    %c0_9 = arith.constant 0 : index
    %10 = vector.load %arg4[%c0_8, %c0_9] : memref<256x128xbf16, #tpu.memory_space<vmem>>, vector<256x128xbf16>
    %cst_10 = arith.constant dense<0.000000e+00> : vector<128x256xf32>
    %11 = tpu.matmul %9, %10, %cst_10 {dimension_numbers = #tpu.dot_dimension_numbers<[1], [1], [0], [0], [0, 0, 1, 0], [], []>} : vector<128x128xbf16>, vector<256x128xbf16>, vector<128x256xf32> -> vector<128x256xf32>
    %c0_11 = arith.constant 0 : index
    %c0_12 = arith.constant 0 : index
    %12 = vector.load %arg5[%c0_11, %c0_12] : memref<1x256xf32, #tpu.memory_space<vmem>>, vector<1x256xf32>
    %13 = vector.broadcast %12 : vector<1x256xf32> to vector<128x256xf32>
    %14 = arith.addf %11, %13 : vector<128x256xf32>
    %cst_13 = arith.constant 0.000000e+00 : f32
    %15 = vector.broadcast %cst_13 : f32 to vector<128x256xf32>
    %16 = arith.maximumf %14, %15 : vector<128x256xf32>
    %c0_14 = arith.constant 0 : index
    %c0_15 = arith.constant 0 : index
    %17 = vector.load %arg7[%c0_14, %c0_15] : memref<128x256xf32, #tpu.memory_space<vmem>>, vector<128x256xf32>
    tpu.vector_store %arg7[%c0_14, %c0_15], %16 {strides = array<i32>} : memref<128x256xf32, #tpu.memory_space<vmem>>, vector<128x256xf32>,
    return
  }
  func.func @transform_0(%arg0: i32) -> (i32, i32) {
    %c0_i32 = arith.constant 0 : i32
    %c0_i32_0 = arith.constant 0 : i32
    return %arg0, %c0_i32 : i32, i32
  }
  func.func @transform_1(%arg0: i32) -> (i32, i32) {
    %c0_i32 = arith.constant 0 : i32
    %c0_i32_0 = arith.constant 0 : i32
    %c0_i32_1 = arith.constant 0 : i32
    return %c0_i32, %c0_i32_0 : i32, i32
  }
  func.func @transform_2(%arg0: i32) -> (i32, i32) {
    %c0_i32 = arith.constant 0 : i32
    %c0_i32_0 = arith.constant 0 : i32
    %c0_i32_1 = arith.constant 0 : i32
    return %c0_i32, %c0_i32_0 : i32, i32
  }
  func.func @transform_3(%arg0: i32) -> (i32, i32) {
    %c0_i32 = arith.constant 0 : i32
    %c0_i32_0 = arith.constant 0 : i32
    %c0_i32_1 = arith.constant 0 : i32
    return %c0_i32, %c0_i32_0 : i32, i32
  }
  func.func @transform_4(%arg0: i32) -> (i32, i32) {
    %c0_i32 = arith.constant 0 : i32
    %c0_i32_0 = arith.constant 0 : i32
    %c0_i32_1 = arith.constant 0 : i32
    return %c0_i32, %c0_i32_0 : i32, i32
  }
  func.func @transform_5(%arg0: i32) -> (i32, i32) {
    %c0_i32 = arith.constant 0 : i32
    %c0_i32_0 = arith.constant 0 : i32
    return %arg0, %c0_i32 : i32, i32
  }
  func.func @transform_6(%arg0: i32) -> (i32, i32) {
    %c0_i32 = arith.constant 0 : i32
    %c0_i32_0 = arith.constant 0 : i32
    return %arg0, %c0_i32 : i32, i32
  }
}

</mosaic_0001>

<llo_original>
// kernel: tpu_custom_call.1
$region0: #{tpu_custom_call.1}
  #allocation0 [shape = 'u32[]', space=smem, size = 0x4, offset = 0x4, fixed_abs, tag = 'smem constant byte address 0x4 - core index']
  #allocation1 [shape = 'u32[144,128]{1,0:T(1,128)}', space=vmem, size = 0x12000, scoped, tag = 'internal scratch']
  %s0 = inlined_call_operand.hbm [shape: bf16[256,256], index: 0, kind: input, shape index: {}]
  %s1 = inlined_call_operand.hbm [shape: bf16[128,256], index: 1, kind: input, shape index: {}]
  %s2 = inlined_call_operand.vmem [shape: f32[1,128], index: 2, kind: input, shape index: {}]
  %s3 = inlined_call_operand.hbm [shape: bf16[256,128], index: 3, kind: input, shape index: {}]
  %s4 = inlined_call_operand.vmem [shape: f32[1,256], index: 4, kind: input, shape index: {}]
  %s5 = inlined_call_operand.hbm [shape: f32[256,128], index: 5, kind: output, shape index: {0}]
  %s6 = inlined_call_operand.hbm [shape: f32[256,256], index: 6, kind: output, shape index: {1}]
  %7 = xla_tuple %s5, %s6
  %s8 = sld [smem:[#allocation0]]
  $region73: #{tpu_custom_call.1} parent=0
    _
  %s10 = ssub.s32 1, %s8
  %s11 = scalar_select 0, %s10, %s8
  $region1: #{tpu_custom_call.1} parent=0
    #allocation2 [shape = 'u8[131072]{0}', space=vmem, size = 0x20000, scoped, tag = 'input window, operand 0']
    #allocation3 [shape = 's32[2]{0}', space=sflag, size = 0x8, scoped, tag = 'scoped memory for tpu_custom_call.1']
    #allocation4 [shape = 's32[2]{0}', space=sflag, size = 0x8, scoped, tag = 'scoped memory for tpu_custom_call.1']
    #allocation5 [shape = 'u8[65536]{0}', space=vmem, size = 0x10000, scoped, tag = 'input window, operand 1, single buffered']
    #allocation6 [shape = 's32[1]{0}', space=sflag, size = 0x4, scoped, tag = 'scoped memory for tpu_custom_call.1']
    #allocation7 [shape = 'u8[65536]{0}', space=vmem, size = 0x10000, scoped, tag = 'input window, operand 3, single buffered']
    #allocation8 [shape = 'u8[131072]{0}', space=vmem, size = 0x20000, scoped, tag = 'output window, operand 0']
    #allocation9 [shape = 'u8[262144]{0}', space=vmem, size = 0x40000, scoped, tag = 'output window, operand 1']
    #allocation10 [shape = 's32[2]{0}', space=sflag, size = 0x8, scoped, tag = 'scoped memory for tpu_custom_call.1']
    %12 = vsyncpa [#allocation3], 0
    %s13 = scalar_lea.sflag [#allocation3], 1
    %14 = vsyncpa %s13, 0
    %15 = vsyncpa [#allocation6], 0
    %16 = vsyncpa [#allocation4], 0
    %s17 = scalar_lea.sflag [#allocation4], 1
    %18 = vsyncpa %s17, 0
    %19 = vsyncpa [#allocation10], 0
    %s20 = scalar_lea.sflag [#allocation10], 1
    %21 = vsyncpa %s20, 0
    loop: start=0, step=1, limit=4
    $region2: #{tpu_custom_call.1} parent=1 // loop_pre_header
      _
    $region3: #{tpu_custom_call.1} parent=1 // loop_header
      %s23 = sphi 0, %s27
      %p24 = scmp.ge.s32.totalorder %s23, 4
      %s33 = sphi 0, %s35
      %s36 = sphi 0, %s33
      %s37 = sphi 0, %s36
      %s53 = sphi 0, %s37
      %s57 = sphi 0, %s57
      %s59 = sphi 0, %s57
      %s60 = sphi 0, %s59
      %s74 = sphi 0, %s60
      %s78 = sphi 0, %s78
      %s80 = sphi 0, %s78
      %s81 = sphi 0, %s80
      %s95 = sphi 0, %s81
      %s99 = sphi 0, %s99
      %s101 = sphi 0, %s99
      %s102 = sphi 0, %s101
      %s116 = sphi 0, %s102
      %s120 = sphi 0, %s120
      %s122 = sphi 0, %s120
      %s123 = sphi 0, %s122
      %s137 = sphi 0, %s123
      %s143 = sphi 0, %s145
      %s146 = sphi 0, %s143
      %s147 = sphi 0, %s146
      %s163 = sphi 0, %s147
      %s169 = sphi 0, %s171
      %s172 = sphi 0, %s169
      %s173 = sphi 0, %s172
      %s189 = sphi 0, %s173
    $region4: #{tpu_custom_call.1} parent=1 // loop_header_branch
      %26 = sbr.rel (%p24) target = $region8
    $region5: #{tpu_custom_call.1} parent=1 // loop_body
      %s28 = ssub.s32 %s23, 1
      %s29 = ssub.s32 %s23, 2
      %s30 = sadd.s32 %s23, 1
      %s31 = ssub.s32 %s23, %s30
      %p32 = scmp.eq.s32.totalorder %s31, 0
      %s34 = sadd.s32 %s33, 1
      %s35 = scalar_select %p32, %s33, %s34
      %p38 = pneg %p32
      %p39 = scmp.eq.s32.totalorder %s23, 1
      %p40 = por %p38, %p39
      %p41 = scmp.ne.s32.totalorder %s33, %s36
      %p42 = scmp.eq.s32.totalorder %s23, 0
      %p43 = por %p41, %p42
      %p44 = scmp.ne.s32.totalorder %s33, %s36
      %p45 = scmp.eq.s32.totalorder %s28, 1
      %p46 = por %p44, %p45
      %p47 = scmp.ne.s32.totalorder %s36, %s37
      %p48 = scmp.eq.s32.totalorder %s28, 0
      %p49 = por %p47, %p48
      %p50 = scmp.ne.s32.totalorder %s36, %s37
      %p51 = scmp.eq.s32.totalorder %s29, 1
      %p52 = por %p50, %p51
      %p54 = scmp.ne.s32.totalorder %s37, %s53
      %p55 = scmp.eq.s32.totalorder %s29, 0
      %p56 = por %p54, %p55
      %s58 = sadd.s32 %s57, 1
      %p61 = scmp.eq.s32.totalorder %s23, 1
      %p62 = scmp.ne.s32.totalorder %s57, %s59
      %p63 = scmp.eq.s32.totalorder %s23, 0
      %p64 = por %p62, %p63
      %p65 = scmp.ne.s32.totalorder %s57, %s59
      %p66 = scmp.eq.s32.totalorder %s28, 1
      %p67 = por %p65, %p66
      %p68 = scmp.ne.s32.totalorder %s59, %s60
      %p69 = scmp.eq.s32.totalorder %s28, 0
      %p70 = por %p68, %p69
      %p71 = scmp.ne.s32.totalorder %s59, %s60
      %p72 = scmp.eq.s32.totalorder %s29, 1
      %p73 = por %p71, %p72
      %p75 = scmp.ne.s32.totalorder %s60, %s74
      %p76 = scmp.eq.s32.totalorder %s29, 0
      %p77 = por %p75, %p76
      %s79 = sadd.s32 %s78, 1
      %p82 = scmp.eq.s32.totalorder %s23, 1
      %p83 = scmp.ne.s32.totalorder %s78, %s80
      %p84 = scmp.eq.s32.totalorder %s23, 0
      %p85 = por %p83, %p84
      %p86 = scmp.ne.s32.totalorder %s78, %s80
      %p87 = scmp.eq.s32.totalorder %s28, 1
      %p88 = por %p86, %p87
      %p89 = scmp.ne.s32.totalorder %s80, %s81
      %p90 = scmp.eq.s32.totalorder %s28, 0
      %p91 = por %p89, %p90
      %p92 = scmp.ne.s32.totalorder %s80, %s81
      %p93 = scmp.eq.s32.totalorder %s29, 1
      %p94 = por %p92, %p93
      %p96 = scmp.ne.s32.totalorder %s81, %s95
      %p97 = scmp.eq.s32.totalorder %s29, 0
      %p98 = por %p96, %p97
      %s100 = sadd.s32 %s99, 1
      %p103 = scmp.eq.s32.totalorder %s23, 1
      %p104 = scmp.ne.s32.totalorder %s99, %s101
      %p105 = scmp.eq.s32.totalorder %s23, 0
      %p106 = por %p104, %p105
      %p107 = scmp.ne.s32.totalorder %s99, %s101
      %p108 = scmp.eq.s32.totalorder %s28, 1
      %p109 = por %p107, %p108
      %p110 = scmp.ne.s32.totalorder %s101, %s102
      %p111 = scmp.eq.s32.totalorder %s28, 0
      %p112 = por %p110, %p111
      %p113 = scmp.ne.s32.totalorder %s101, %s102
      %p114 = scmp.eq.s32.totalorder %s29, 1
      %p115 = por %p113, %p114
      %p117 = scmp.ne.s32.totalorder %s102, %s116
      %p118 = scmp.eq.s32.totalorder %s29, 0
      %p119 = por %p117, %p118
      %s121 = sadd.s32 %s120, 1
      %p124 = scmp.eq.s32.totalorder %s23, 1
      %p125 = scmp.ne.s32.totalorder %s120, %s122
      %p126 = scmp.eq.s32.totalorder %s23, 0
      %p127 = por %p125, %p126
      %p128 = scmp.ne.s32.totalorder %s120, %s122
      %p129 = scmp.eq.s32.totalorder %s28, 1
      %p130 = por %p128, %p129
      %p131 = scmp.ne.s32.totalorder %s122, %s123
      %p132 = scmp.eq.s32.totalorder %s28, 0
      %p133 = por %p131, %p132
      %p134 = scmp.ne.s32.totalorder %s122, %s123
      %p135 = scmp.eq.s32.totalorder %s29, 1
      %p136 = por %p134, %p135
      %p138 = scmp.ne.s32.totalorder %s123, %s137
      %p139 = scmp.eq.s32.totalorder %s29, 0
      %p140 = por %p138, %p139
      %s141 = ssub.s32 %s23, %s30
      %p142 = scmp.eq.s32.totalorder %s141, 0
      %s144 = sadd.s32 %s143, 1
      %s145 = scalar_select %p142, %s143, %s144
      %p148 = pneg %p142
      %p149 = scmp.eq.s32.totalorder %s23, 1
      %p150 = por %p148, %p149
      %p151 = scmp.ne.s32.totalorder %s143, %s146
      %p152 = scmp.eq.s32.totalorder %s23, 0
      %p153 = por %p151, %p152
      %p154 = scmp.ne.s32.totalorder %s143, %s146
      %p155 = scmp.eq.s32.totalorder %s28, 1
      %p156 = por %p154, %p155
      %p157 = scmp.ne.s32.totalorder %s146, %s147
      %p158 = scmp.eq.s32.totalorder %s28, 0
      %p159 = por %p157, %p158
      %p160 = scmp.ne.s32.totalorder %s146, %s147
      %p161 = scmp.eq.s32.totalorder %s29, 1
      %p162 = por %p160, %p161
      %p164 = scmp.ne.s32.totalorder %s147, %s163
      %p165 = scmp.eq.s32.totalorder %s29, 0
      %p166 = por %p164, %p165
      %s167 = ssub.s32 %s23, %s30
      %p168 = scmp.eq.s32.totalorder %s167, 0
      %s170 = sadd.s32 %s169, 1
      %s171 = scalar_select %p168, %s169, %s170
      %p174 = pneg %p168
      %p175 = scmp.eq.s32.totalorder %s23, 1
      %p176 = por %p174, %p175
      %p177 = scmp.ne.s32.totalorder %s169, %s172
      %p178 = scmp.eq.s32.totalorder %s23, 0
      %p179 = por %p177, %p178
      %p180 = scmp.ne.s32.totalorder %s169, %s172
      %p181 = scmp.eq.s32.totalorder %s28, 1
      %p182 = por %p180, %p181
      %p183 = scmp.ne.s32.totalorder %s172, %s173
      %p184 = scmp.eq.s32.totalorder %s28, 0
      %p185 = por %p183, %p184
      %p186 = scmp.ne.s32.totalorder %s172, %s173
      %p187 = scmp.eq.s32.totalorder %s29, 1
      %p188 = por %p186, %p187
      %p190 = scmp.ne.s32.totalorder %s173, %s189
      %p191 = scmp.eq.s32.totalorder %s29, 0
      %p192 = por %p190, %p191
      %p193 = scmp.le.s32.totalorder 1, %s23
      %p194 = scmp.lt.s32.totalorder %s23, 3
      %p195 = pnand %p193, %p194
      %p196 = pneg %p195
      // Predicated region
      $region9: #{tpu_custom_call.1} parent=5 // pred_check
        _
      $region10: #{tpu_custom_call.1} parent=5 // pred_check_branch
        %198 = sbr.rel (%p195) target = $region12
      $region11: #{tpu_custom_call.1} parent=5 // pred_region
        %s199 = ssub.s32 %s23, 1
        // Predicated region
        $region13: #{tpu_custom_call.1} parent=11 // pred_check
          %p200 = pneg %p70
        $region14: #{tpu_custom_call.1} parent=11 // pred_check_branch
          %202 = sbr.rel (%p200) target = $region16
        $region15: #{tpu_custom_call.1} parent=11 // pred_region
          %s204 = ssub.s32 2048, 2048
          %205 = vsyncadd [#allocation6], %s204
          %s206 = sshll.u32 [#allocation5], 4
          %s207 = int_to_ptr.vmem [resolvable:$true] %s206
          %212 = dma.hbm_to_vmem [thread:$0]  %s1, 2048, %s207, [#allocation6], 128, 128, 8
        $region16: #{tpu_custom_call.1} parent=11 // pred_fallthru
          _
        // Predicated region
        $region17: #{tpu_custom_call.1} parent=11 // pred_check
          %p213 = pneg %p91
        $region18: #{tpu_custom_call.1} parent=11 // pred_check_branch
          %215 = sbr.rel (%p213) target = $region20
        $region19: #{tpu_custom_call.1} parent=11 // pred_region
          _
        $region20: #{tpu_custom_call.1} parent=11 // pred_fallthru
          _
        // Predicated region
        $region21: #{tpu_custom_call.1} parent=11 // pred_check
          %p216 = pneg %p112
        $region22: #{tpu_custom_call.1} parent=11 // pred_check_branch
          %218 = sbr.rel (%p216) target = $region24
        $region23: #{tpu_custom_call.1} parent=11 // pred_region
          %s220 = ssub.s32 2048, 2048
          %221 = vsyncadd [#allocation6], %s220
          %s222 = sshll.u32 [#allocation7], 4
          %s223 = int_to_ptr.vmem [resolvable:$true] %s222
          %228 = dma.hbm_to_vmem [thread:$0]  %s3, 2048, %s223, [#allocation6], 64, 64, 4
        $region24: #{tpu_custom_call.1} parent=11 // pred_fallthru
          _
        // Predicated region
        $region25: #{tpu_custom_call.1} parent=11 // pred_check
          %p229 = pneg %p133
        $region26: #{tpu_custom_call.1} parent=11 // pred_check_branch
          %231 = sbr.rel (%p229) target = $region28
        $region27: #{tpu_custom_call.1} parent=11 // pred_region
          _
        $region28: #{tpu_custom_call.1} parent=11 // pred_fallthru
          _
      $region12: #{tpu_custom_call.1} parent=5 // pred_fallthru
        _
      %p232 = scmp.lt.s32.totalorder %s23, 2
      // Predicated region
      $region29: #{tpu_custom_call.1} parent=5 // pred_check
        %p233 = pneg %p232
      $region30: #{tpu_custom_call.1} parent=5 // pred_check_branch
        %235 = sbr.rel (%p233) target = $region32
      $region31: #{tpu_custom_call.1} parent=5 // pred_region
        // Predicated region
        $region33: #{tpu_custom_call.1} parent=31 // pred_check
          %p236 = pneg %p43
        $region34: #{tpu_custom_call.1} parent=31 // pred_check_branch
          %238 = sbr.rel (%p236) target = $region36
        $region35: #{tpu_custom_call.1} parent=31 // pred_region
          %s239 = sand.u32 %s33, 1
          %s240 = scalar_lea.sflag [#allocation3], %s239
          %s241 = sand.u32 %s33, 1
          %s242 = smul.addr %s241, 128
          %s243 = scalar_lea.vmem [#allocation2], %s242
          %s244 = smul.u32 16, %s23
          %s246 = ssub.s32 2048, 2048
          %247 = vsyncadd %s240, %s246
          %s248 = smul.addr %s244, 2
          %s249 = smul.addr %s248, 64
          %s250 = scalar_lea.hbm %s0, %s249
          %s251 = sshll.u32 %s243, 4
          %s252 = int_to_ptr.vmem [resolvable:$true] %s251
          %257 = dma.hbm_to_vmem [thread:$0]  %s250, 2048, %s252, %s240, 128, 128, 8
        $region36: #{tpu_custom_call.1} parent=31 // pred_fallthru
          _
      $region32: #{tpu_custom_call.1} parent=5 // pred_fallthru
        _
      %p258 = scmp.le.s32.totalorder 1, %s23
      %p259 = scmp.lt.s32.totalorder %s23, 3
      %p260 = pnand %p258, %p259
      %p261 = pneg %p260
      // Predicated region
      $region37: #{tpu_custom_call.1} parent=5 // pred_check
        _
      $region38: #{tpu_custom_call.1} parent=5 // pred_check_branch
        %263 = sbr.rel (%p260) target = $region40
      $region39: #{tpu_custom_call.1} parent=5 // pred_region
        %s264 = ssub.s32 %s23, 1
        %s265 = sand.u32 %s36, 1
        %s266 = scalar_lea.sflag [#allocation3], %s265
        %s267 = sand.u32 %s36, 1
        %s268 = smul.addr %s267, 128
        %s269 = scalar_lea.vmem [#allocation2], %s268
        // Predicated region
        $region41: #{tpu_custom_call.1} parent=39 // pred_check
          %p270 = pneg %p49
        $region42: #{tpu_custom_call.1} parent=39 // pred_check_branch
          %272 = sbr.rel (%p270) target = $region44
        $region43: #{tpu_custom_call.1} parent=39 // pred_region
          %273 = dma.done %s266, 2048
        $region44: #{tpu_custom_call.1} parent=39 // pred_fallthru
          _
        // Predicated region
        $region45: #{tpu_custom_call.1} parent=39 // pred_check
          %p274 = pneg %p70
        $region46: #{tpu_custom_call.1} parent=39 // pred_check_branch
          %276 = sbr.rel (%p274) target = $region48
        $region47: #{tpu_custom_call.1} parent=39 // pred_region
          %277 = dma.done [#allocation6], 2048
        $region48: #{tpu_custom_call.1} parent=39 // pred_fallthru
          _
        // Predicated region
        $region49: #{tpu_custom_call.1} parent=39 // pred_check
          %p278 = pneg %p112
        $region50: #{tpu_custom_call.1} parent=39 // pred_check_branch
          %280 = sbr.rel (%p278) target = $region52
        $region51: #{tpu_custom_call.1} parent=39 // pred_region
          %281 = dma.done [#allocation6], 2048
        $region52: #{tpu_custom_call.1} parent=39 // pred_fallthru
          _
        %s282 = sand.u32 %s36, 1
        %s283 = scalar_lea.sflag [#allocation3], %s282
        %s284 = sand.u32 %s36, 1
        %s285 = smul.addr %s284, 128
        %s286 = scalar_lea.vmem [#allocation2], %s285
        %p287 = pneg %p49
        %p288 = pneg %p46
        %p289 = pneg %p70
        %p290 = pneg %p67
        %p291 = pneg %p91
        %p292 = pneg %p88
        %p293 = pneg %p112
        %p294 = pneg %p109
        %p295 = pneg %p133
        %p296 = pneg %p130
        %p297 = pneg %p159
        %p298 = pneg %p156
        %s299 = sand.u32 %s146, 1
        %s300 = scalar_lea.sflag [#allocation4], %s299
        %s301 = sand.u32 %s146, 1
        %s302 = smul.addr %s301, 128
        %s303 = scalar_lea.vmem [#allocation8], %s302
        %p304 = pneg %p185
        %p305 = pneg %p182
        %s306 = sand.u32 %s172, 1
        %s307 = scalar_lea.sflag [#allocation10], %s306
        %s308 = sand.u32 %s172, 1
        %s309 = smul.addr %s308, 256
        %s310 = scalar_lea.vmem [#allocation9], %s309
        %s311 = smul.u32 16, %s28
        %s312 = smul.u32 16, %s28
        %s313 = smul.u32 16, %s28
        %v315 = vld [vmem:[%s269] sm:$0xff]
        %v316 = vld [vmem:[%s269 + $0x8] sm:$0xff]
        %v317 = vld [vmem:[%s269 + $0x10] sm:$0xff]
        %v318 = vld [vmem:[%s269 + $0x18] sm:$0xff]
        %v319 = vld [vmem:[%s269 + $0x20] sm:$0xff]
        %v320 = vld [vmem:[%s269 + $0x28] sm:$0xff]
        %v321 = vld [vmem:[%s269 + $0x30] sm:$0xff]
        %v322 = vld [vmem:[%s269 + $0x38] sm:$0xff]
        %v323 = vld [vmem:[%s269 + $0x40] sm:$0xff]
        %v324 = vld [vmem:[%s269 + $0x48] sm:$0xff]
        %v325 = vld [vmem:[%s269 + $0x50] sm:$0xff]
        %v326 = vld [vmem:[%s269 + $0x58] sm:$0xff]
        %v327 = vld [vmem:[%s269 + $0x60] sm:$0xff]
        %v328 = vld [vmem:[%s269 + $0x68] sm:$0xff]
        %v329 = vld [vmem:[%s269 + $0x70] sm:$0xff]
        %v330 = vld [vmem:[%s269 + $0x78] sm:$0xff]
        %v331 = vld [vmem:[#allocation5] sm:$0xff]
        %v332 = vld [vmem:[#allocation5 + $0x8] sm:$0xff]
        %v333 = vld [vmem:[#allocation5 + $0x10] sm:$0xff]
        %v334 = vld [vmem:[#allocation5 + $0x18] sm:$0xff]
        %v335 = vld [vmem:[#allocation5 + $0x20] sm:$0xff]
        %v336 = vld [vmem:[#allocation5 + $0x28] sm:$0xff]
        %v337 = vld [vmem:[#allocation5 + $0x30] sm:$0xff]
        %v338 = vld [vmem:[#allocation5 + $0x38] sm:$0xff]
        %v339 = vld [vmem:[#allocation5 + $0x40] sm:$0xff]
        %v340 = vld [vmem:[#allocation5 + $0x48] sm:$0xff]
        %v341 = vld [vmem:[#allocation5 + $0x50] sm:$0xff]
        %v342 = vld [vmem:[#allocation5 + $0x58] sm:$0xff]
        %v343 = vld [vmem:[#allocation5 + $0x60] sm:$0xff]
        %v344 = vld [vmem:[#allocation5 + $0x68] sm:$0xff]
        %v345 = vld [vmem:[#allocation5 + $0x70] sm:$0xff]
        %v346 = vld [vmem:[#allocation5 + $0x78] sm:$0xff]
        %v347 = vld [vmem:[%s2] sm:$0x1]
        %v349 = vlaneseq
        %v350 = vshrl.u32 %v349, 7
        %v351 = vsub.s32 0, %v350
        %v352 = vrot.slane %v347, %v351
        %v370 = vunpack.c.l.b16 %v315
        %v371 = vunpack.c.h.b16 %v315
        %v372 = vunpack.c.l.b16 %v316
        %v373 = vunpack.c.h.b16 %v316
        %v374 = vunpack.c.l.b16 %v317
        %v375 = vunpack.c.h.b16 %v317
        %v376 = vunpack.c.l.b16 %v318
        %v377 = vunpack.c.h.b16 %v318
        %v378 = vunpack.c.l.b16 %v319
        %v379 = vunpack.c.h.b16 %v319
        %v380 = vunpack.c.l.b16 %v320
        %v381 = vunpack.c.h.b16 %v320
        %v382 = vunpack.c.l.b16 %v321
        %v383 = vunpack.c.h.b16 %v321
        %v384 = vunpack.c.l.b16 %v322
        %v385 = vunpack.c.h.b16 %v322
        %v386 = vunpack.c.l.b16 %v323
        %v387 = vunpack.c.h.b16 %v323
        %v388 = vunpack.c.l.b16 %v324
        %v389 = vunpack.c.h.b16 %v324
        %v390 = vunpack.c.l.b16 %v325
        %v391 = vunpack.c.h.b16 %v325
        %v392 = vunpack.c.l.b16 %v326
        %v393 = vunpack.c.h.b16 %v326
        %v394 = vunpack.c.l.b16 %v327
        %v395 = vunpack.c.h.b16 %v327
        %v396 = vunpack.c.l.b16 %v328
        %v397 = vunpack.c.h.b16 %v328
        %v398 = vunpack.c.l.b16 %v329
        %v399 = vunpack.c.h.b16 %v329
        %v400 = vunpack.c.l.b16 %v330
        %v401 = vunpack.c.h.b16 %v330
        %v402 = vpack.c.b16 %v372, %v370
        %v403 = vpack.c.b16 %v373, %v371
        %v404 = vpack.c.b16 %v376, %v374
        %v405 = vpack.c.b16 %v377, %v375
        %v406 = vpack.c.b16 %v380, %v378
        %v407 = vpack.c.b16 %v381, %v379
        %v408 = vpack.c.b16 %v384, %v382
        %v409 = vpack.c.b16 %v385, %v383
        %v410 = vpack.c.b16 %v388, %v386
        %v411 = vpack.c.b16 %v389, %v387
        %v412 = vpack.c.b16 %v392, %v390
        %v413 = vpack.c.b16 %v393, %v391
        %v414 = vpack.c.b16 %v396, %v394
        %v415 = vpack.c.b16 %v397, %v395
        %v416 = vpack.c.b16 %v400, %v398
        %v417 = vpack.c.b16 %v401, %v399
        %v450 = vunpack.c.l.b16 %v331
        %v451 = vunpack.c.h.b16 %v331
        %v452 = vunpack.c.l.b16 %v332
        %v453 = vunpack.c.h.b16 %v332
        %v454 = vunpack.c.l.b16 %v333
        %v455 = vunpack.c.h.b16 %v333
        %v456 = vunpack.c.l.b16 %v334
        %v457 = vunpack.c.h.b16 %v334
        %v458 = vunpack.c.l.b16 %v335
        %v459 = vunpack.c.h.b16 %v335
        %v460 = vunpack.c.l.b16 %v336
        %v461 = vunpack.c.h.b16 %v336
        %v462 = vunpack.c.l.b16 %v337
        %v463 = vunpack.c.h.b16 %v337
        %v464 = vunpack.c.l.b16 %v338
        %v465 = vunpack.c.h.b16 %v338
        %v466 = vunpack.c.l.b16 %v339
        %v467 = vunpack.c.h.b16 %v339
        %v468 = vunpack.c.l.b16 %v340
        %v469 = vunpack.c.h.b16 %v340
        %v470 = vunpack.c.l.b16 %v341
        %v471 = vunpack.c.h.b16 %v341
        %v472 = vunpack.c.l.b16 %v342
        %v473 = vunpack.c.h.b16 %v342
        %v474 = vunpack.c.l.b16 %v343
        %v475 = vunpack.c.h.b16 %v343
        %v476 = vunpack.c.l.b16 %v344
        %v477 = vunpack.c.h.b16 %v344
        %v478 = vunpack.c.l.b16 %v345
        %v479 = vunpack.c.h.b16 %v345
        %v480 = vunpack.c.l.b16 %v346
        %v481 = vunpack.c.h.b16 %v346
        %v482 = vpack.c.b16 %v452, %v450
        %v483 = vpack.c.b16 %v453, %v451
        %v484 = vpack.c.b16 %v456, %v454
        %v485 = vpack.c.b16 %v457, %v455
        %v486 = vpack.c.b16 %v460, %v458
        %v487 = vpack.c.b16 %v461, %v459
        %v488 = vpack.c.b16 %v464, %v462
        %v489 = vpack.c.b16 %v465, %v463
        %v490 = vpack.c.b16 %v468, %v466
        %v491 = vpack.c.b16 %v469, %v467
        %v492 = vpack.c.b16 %v472, %v470
        %v493 = vpack.c.b16 %v473, %v471
        %v494 = vpack.c.b16 %v476, %v474
        %v495 = vpack.c.b16 %v477, %v475
        %v496 = vpack.c.b16 %v480, %v478
        %v497 = vpack.c.b16 %v481, %v479
        %514 = vmatprep.subr.bf16.mxu0 %v483
        %515 = vmatpush1.bf16.xpose.msra.mxu0 %v482
        %516 = vmatprep.subr.bf16.mxu0 %v485
        %517 = vmatpush1.bf16.xpose.msra.mxu0 %v484
        %518 = vmatprep.subr.bf16.mxu0 %v487
        %519 = vmatpush1.bf16.xpose.msra.mxu0 %v486
        %520 = vmatprep.subr.bf16.mxu0 %v489
        %521 = vmatpush1.bf16.xpose.msra.mxu0 %v488
        %522 = vmatprep.subr.bf16.mxu0 %v491
        %523 = vmatpush1.bf16.xpose.msra.mxu0 %v490
        %524 = vmatprep.subr.bf16.mxu0 %v493
        %525 = vmatpush1.bf16.xpose.msra.mxu0 %v492
        %526 = vmatprep.subr.bf16.mxu0 %v495
        %527 = vmatpush1.bf16.xpose.msra.mxu0 %v494
        %528 = vmatprep.subr.bf16.mxu0 %v497
        %529 = vmatpush1.bf16.xpose.msra.mxu0 %v496
        %530 = vmatprep.subr.bf16.mxu0 0
        %531 = vmatpush1.bf16.xpose.msra.mxu0 0
        %532 = vmatprep.subr.bf16.mxu0 0
        %533 = vmatpush1.bf16.xpose.msra.mxu0 0
        %534 = vmatprep.subr.bf16.mxu0 0
        %535 = vmatpush1.bf16.xpose.msra.mxu0 0
        %536 = vmatprep.subr.bf16.mxu0 0
        %537 = vmatpush1.bf16.xpose.msra.mxu0 0
        %538 = vmatprep.subr.bf16.mxu0 0
        %539 = vmatpush1.bf16.xpose.msra.mxu0 0
        %540 = vmatprep.subr.bf16.mxu0 0
        %541 = vmatpush1.bf16.xpose.msra.mxu0 0
        %542 = vmatprep.subr.bf16.mxu0 0
        %543 = vmatpush1.bf16.xpose.msra.mxu0 0
        %544 = vmatprep.subr.bf16.mxu0 0
        %545 = vmatpush1.bf16.xpose.msra.mxu0 0
        %546 = vmatprep.mubr.bf16.mxu0 %v403
        %547 = vmatmul.mubr.bf16.gmra.mrb[0].mxu0 %v402
        %v548 = vpop.f32.mrb[0].mxu0
        %v549 = vadd.f32 %v352, %v548
        %v550 = vpop.f32.mrb[0].mxu0
        %v551 = vpop.f32.mrb[0].mxu0
        %v552 = vadd.f32 %v352, %v551
        %v553 = vpop.f32.mrb[0].mxu0
        %554 = vmatprep.mubr.bf16.mxu0 %v405
        %555 = vmatmul.mubr.bf16.gmra.mrb[0].mxu0 %v404
        %v556 = vpop.f32.mrb[0].mxu0
        %v557 = vadd.f32 %v352, %v556
        %v558 = vpop.f32.mrb[0].mxu0
        %v559 = vpop.f32.mrb[0].mxu0
        %v560 = vadd.f32 %v352, %v559
        %v561 = vpop.f32.mrb[0].mxu0
        %562 = vmatprep.mubr.bf16.mxu0 %v407
        %563 = vmatmul.mubr.bf16.gmra.mrb[0].mxu0 %v406
        %v564 = vpop.f32.mrb[0].mxu0
        %v565 = vadd.f32 %v352, %v564
        %v566 = vpop.f32.mrb[0].mxu0
        %v567 = vpop.f32.mrb[0].mxu0
        %v568 = vadd.f32 %v352, %v567
        %v569 = vpop.f32.mrb[0].mxu0
        %570 = vmatprep.mubr.bf16.mxu0 %v409
        %571 = vmatmul.mubr.bf16.gmra.mrb[0].mxu0 %v408
        %v572 = vpop.f32.mrb[0].mxu0
        %v573 = vadd.f32 %v352, %v572
        %v574 = vpop.f32.mrb[0].mxu0
        %v575 = vpop.f32.mrb[0].mxu0
        %v576 = vadd.f32 %v352, %v575
        %v577 = vpop.f32.mrb[0].mxu0
        %578 = vmatprep.mubr.bf16.mxu0 %v411
        %579 = vmatmul.mubr.bf16.gmra.mrb[0].mxu0 %v410
        %v580 = vpop.f32.mrb[0].mxu0
        %v581 = vadd.f32 %v352, %v580
        %v582 = vpop.f32.mrb[0].mxu0
        %v583 = vpop.f32.mrb[0].mxu0
        %v584 = vadd.f32 %v352, %v583
        %v585 = vpop.f32.mrb[0].mxu0
        %586 = vmatprep.mubr.bf16.mxu0 %v413
        %587 = vmatmul.mubr.bf16.gmra.mrb[0].mxu0 %v412
        %v588 = vpop.f32.mrb[0].mxu0
        %v589 = vadd.f32 %v352, %v588
        %v590 = vpop.f32.mrb[0].mxu0
        %v591 = vpop.f32.mrb[0].mxu0
        %v592 = vadd.f32 %v352, %v591
        %v593 = vpop.f32.mrb[0].mxu0
        %594 = vmatprep.mubr.bf16.mxu0 %v415
        %595 = vmatmul.mubr.bf16.gmra.mrb[0].mxu0 %v414
        %v596 = vpop.f32.mrb[0].mxu0
        %v597 = vadd.f32 %v352, %v596
        %v598 = vpop.f32.mrb[0].mxu0
        %v599 = vpop.f32.mrb[0].mxu0
        %v600 = vadd.f32 %v352, %v599
        %v601 = vpop.f32.mrb[0].mxu0
        %602 = vmatprep.mubr.bf16.mxu0 %v417
        %603 = vmatmul.mubr.bf16.gmra.mrb[0].mxu0 %v416
        %v604 = vpop.f32.mrb[0].mxu0
        %v605 = vadd.f32 %v352, %v604
        %v606 = vpop.f32.mrb[0].mxu0
        %v607 = vpop.f32.mrb[0].mxu0
        %v608 = vadd.f32 %v352, %v607
        %v609 = vpop.f32.mrb[0].mxu0
        %610 = vdwg.mxu0
        %v611 = vmax.f32 %v549, 0.0
        %v612 = vmax.f32 %v552, 0.0
        %v613 = vmax.f32 %v557, 0.0
        %v614 = vmax.f32 %v560, 0.0
        %v615 = vmax.f32 %v565, 0.0
        %v616 = vmax.f32 %v568, 0.0
        %v617 = vmax.f32 %v573, 0.0
        %v618 = vmax.f32 %v576, 0.0
        %v619 = vmax.f32 %v581, 0.0
        %v620 = vmax.f32 %v584, 0.0
        %v621 = vmax.f32 %v589, 0.0
        %v622 = vmax.f32 %v592, 0.0
        %v623 = vmax.f32 %v597, 0.0
        %v624 = vmax.f32 %v600, 0.0
        %v625 = vmax.f32 %v605, 0.0
        %v626 = vmax.f32 %v608, 0.0
        %627 = vst [vmem:[%s303] sm:$0xff] %v611
        %628 = vst [vmem:[%s303 + $0x8] sm:$0xff] %v612
        %629 = vst [vmem:[%s303 + $0x10] sm:$0xff] %v613
        %630 = vst [vmem:[%s303 + $0x18] sm:$0xff] %v614
        %631 = vst [vmem:[%s303 + $0x20] sm:$0xff] %v615
        %632 = vst [vmem:[%s303 + $0x28] sm:$0xff] %v616
        %633 = vst [vmem:[%s303 + $0x30] sm:$0xff] %v617
        %634 = vst [vmem:[%s303 + $0x38] sm:$0xff] %v618
        %635 = vst [vmem:[%s303 + $0x40] sm:$0xff] %v619
        %636 = vst [vmem:[%s303 + $0x48] sm:$0xff] %v620
        %637 = vst [vmem:[%s303 + $0x50] sm:$0xff] %v621
        %638 = vst [vmem:[%s303 + $0x58] sm:$0xff] %v622
        %639 = vst [vmem:[%s303 + $0x60] sm:$0xff] %v623
        %640 = vst [vmem:[%s303 + $0x68] sm:$0xff] %v624
        %641 = vst [vmem:[%s303 + $0x70] sm:$0xff] %v625
        %642 = vst [vmem:[%s303 + $0x78] sm:$0xff] %v626
        %v643 = vpack.c.bf16 %v612, %v611
        %v644 = vpack.c.bf16 %v614, %v613
        %v645 = vpack.c.bf16 %v616, %v615
        %v646 = vpack.c.bf16 %v618, %v617
        %v647 = vpack.c.bf16 %v620, %v619
        %v648 = vpack.c.bf16 %v622, %v621
        %v649 = vpack.c.bf16 %v624, %v623
        %v650 = vpack.c.bf16 %v626, %v625
        %v651 = vld [vmem:[#allocation7] sm:$0xf]
        %v652 = vld [vmem:[#allocation7 + $0x4] sm:$0xf]
        %v653 = vld [vmem:[#allocation7 + $0x8] sm:$0xf]
        %v654 = vld [vmem:[#allocation7 + $0xc] sm:$0xf]
        %v655 = vld [vmem:[#allocation7 + $0x10] sm:$0xf]
        %v656 = vld [vmem:[#allocation7 + $0x14] sm:$0xf]
        %v657 = vld [vmem:[#allocation7 + $0x18] sm:$0xf]
        %v658 = vld [vmem:[#allocation7 + $0x1c] sm:$0xf]
        %v659 = vld [vmem:[#allocation7 + $0x20] sm:$0xf]
        %v660 = vld [vmem:[#allocation7 + $0x24] sm:$0xf]
        %v661 = vld [vmem:[#allocation7 + $0x28] sm:$0xf]
        %v662 = vld [vmem:[#allocation7 + $0x2c] sm:$0xf]
        %v663 = vld [vmem:[#allocation7 + $0x30] sm:$0xf]
        %v664 = vld [vmem:[#allocation7 + $0x34] sm:$0xf]
        %v665 = vld [vmem:[#allocation7 + $0x38] sm:$0xf]
        %v666 = vld [vmem:[#allocation7 + $0x3c] sm:$0xf]
        %v667 = vld [vmem:[#allocation7 + $0x40] sm:$0xf]
        %v668 = vld [vmem:[#allocation7 + $0x44] sm:$0xf]
        %v669 = vld [vmem:[#allocation7 + $0x48] sm:$0xf]
        %v670 = vld [vmem:[#allocation7 + $0x4c] sm:$0xf]
        %v671 = vld [vmem:[#allocation7 + $0x50] sm:$0xf]
        %v672 = vld [vmem:[#allocation7 + $0x54] sm:$0xf]
        %v673 = vld [vmem:[#allocation7 + $0x58] sm:$0xf]
        %v674 = vld [vmem:[#allocation7 + $0x5c] sm:$0xf]
        %v675 = vld [vmem:[#allocation7 + $0x60] sm:$0xf]
        %v676 = vld [vmem:[#allocation7 + $0x64] sm:$0xf]
        %v677 = vld [vmem:[#allocation7 + $0x68] sm:$0xf]
        %v678 = vld [vmem:[#allocation7 + $0x6c] sm:$0xf]
        %v679 = vld [vmem:[#allocation7 + $0x70] sm:$0xf]
        %v680 = vld [vmem:[#allocation7 + $0x74] sm:$0xf]
        %v681 = vld [vmem:[#allocation7 + $0x78] sm:$0xf]
        %v682 = vld [vmem:[#allocation7 + $0x7c] sm:$0xf]
        %v683 = vld [vmem:[%s4] sm:$0x3]
        %v685 = vlaneseq
        %v686 = vshrl.u32 %v685, 7
        %v687 = vsub.s32 0, %v686
        %v688 = vrot.slane %v683, %v687
        %v689 = vlaneseq
        %v690 = vshrl.u32 %v689, 7
        %v691 = vsub.s32 1, %v690
        %v692 = vrot.slane %v683, %v691
        %v727 = vunpack.c.l.b16 %v651
        %v728 = vunpack.c.l.b16 %v652
        %v729 = vunpack.c.l.b16 %v653
        %v730 = vunpack.c.l.b16 %v654
        %v731 = vunpack.c.l.b16 %v655
        %v732 = vunpack.c.l.b16 %v656
        %v733 = vunpack.c.l.b16 %v657
        %v734 = vunpack.c.l.b16 %v658
        %v735 = vunpack.c.l.b16 %v659
        %v736 = vunpack.c.l.b16 %v660
        %v737 = vunpack.c.l.b16 %v661
        %v738 = vunpack.c.l.b16 %v662
        %v739 = vunpack.c.l.b16 %v663
        %v740 = vunpack.c.l.b16 %v664
        %v741 = vunpack.c.l.b16 %v665
        %v742 = vunpack.c.l.b16 %v666
        %v743 = vunpack.c.l.b16 %v667
        %v744 = vunpack.c.l.b16 %v668
        %v745 = vunpack.c.l.b16 %v669
        %v746 = vunpack.c.l.b16 %v670
        %v747 = vunpack.c.l.b16 %v671
        %v748 = vunpack.c.l.b16 %v672
        %v749 = vunpack.c.l.b16 %v673
        %v750 = vunpack.c.l.b16 %v674
        %v751 = vunpack.c.l.b16 %v675
        %v752 = vunpack.c.l.b16 %v676
        %v753 = vunpack.c.l.b16 %v677
        %v754 = vunpack.c.l.b16 %v678
        %v755 = vunpack.c.l.b16 %v679
        %v756 = vunpack.c.l.b16 %v680
        %v757 = vunpack.c.l.b16 %v681
        %v758 = vunpack.c.l.b16 %v682
        %v759 = vpack.c.b16 %v728, %v727
        %v760 = vpack.c.b16 %v730, %v729
        %v761 = vpack.c.b16 %v732, %v731
        %v762 = vpack.c.b16 %v734, %v733
        %v763 = vpack.c.b16 %v736, %v735
        %v764 = vpack.c.b16 %v738, %v737
        %v765 = vpack.c.b16 %v740, %v739
        %v766 = vpack.c.b16 %v742, %v741
        %v767 = vpack.c.b16 %v744, %v743
        %v768 = vpack.c.b16 %v746, %v745
        %v769 = vpack.c.b16 %v748, %v747
        %v770 = vpack.c.b16 %v750, %v749
        %v771 = vpack.c.b16 %v752, %v751
        %v772 = vpack.c.b16 %v754, %v753
        %v773 = vpack.c.b16 %v756, %v755
        %v774 = vpack.c.b16 %v758, %v757
        %791 = vmatprep.subr.bf16.mxu0 0
        %792 = vmatpush1.bf16.xpose.msra.mxu0 %v759
        %793 = vmatprep.subr.bf16.mxu0 0
        %794 = vmatpush1.bf16.xpose.msra.mxu0 %v760
        %795 = vmatprep.subr.bf16.mxu0 0
        %796 = vmatpush1.bf16.xpose.msra.mxu0 %v761
        %797 = vmatprep.subr.bf16.mxu0 0
        %798 = vmatpush1.bf16.xpose.msra.mxu0 %v762
        %799 = vmatprep.subr.bf16.mxu0 0
        %800 = vmatpush1.bf16.xpose.msra.mxu0 %v763
        %801 = vmatprep.subr.bf16.mxu0 0
        %802 = vmatpush1.bf16.xpose.msra.mxu0 %v764
        %803 = vmatprep.subr.bf16.mxu0 0
        %804 = vmatpush1.bf16.xpose.msra.mxu0 %v765
        %805 = vmatprep.subr.bf16.mxu0 0
        %806 = vmatpush1.bf16.xpose.msra.mxu0 %v766
        %807 = vmatprep.subr.bf16.mxu0 0
        %808 = vmatpush1.bf16.xpose.msra.mxu0 %v767
        %809 = vmatprep.subr.bf16.mxu0 0
        %810 = vmatpush1.bf16.xpose.msra.mxu0 %v768
        %811 = vmatprep.subr.bf16.mxu0 0
        %812 = vmatpush1.bf16.xpose.msra.mxu0 %v769
        %813 = vmatprep.subr.bf16.mxu0 0
        %814 = vmatpush1.bf16.xpose.msra.mxu0 %v770
        %815 = vmatprep.subr.bf16.mxu0 0
        %816 = vmatpush1.bf16.xpose.msra.mxu0 %v771
        %817 = vmatprep.subr.bf16.mxu0 0
        %818 = vmatpush1.bf16.xpose.msra.mxu0 %v772
        %819 = vmatprep.subr.bf16.mxu0 0
        %820 = vmatpush1.bf16.xpose.msra.mxu0 %v773
        %821 = vmatprep.subr.bf16.mxu0 0
        %822 = vmatpush1.bf16.xpose.msra.mxu0 %v774
        %823 = vmatprep.mubr.bf16.mxu0 0
        %824 = vmatmul.mubr.bf16.gmra.mrb[0].mxu0 %v643
        %v825 = vpop.f32.mrb[0].mxu0
        %v826 = vadd.f32 %v688, %v825
        %v827 = vpop.f32.mrb[0].mxu0
        %v828 = vadd.f32 %v692, %v827
        %v829 = vpop.f32.mrb[0].mxu0
        %v830 = vadd.f32 %v688, %v829
        %v831 = vpop.f32.mrb[0].mxu0
        %v832 = vadd.f32 %v692, %v831
        %833 = vmatprep.mubr.bf16.mxu0 0
        %834 = vmatmul.mubr.bf16.gmra.mrb[0].mxu0 %v644
        %v835 = vpop.f32.mrb[0].mxu0
        %v836 = vadd.f32 %v688, %v835
        %v837 = vpop.f32.mrb[0].mxu0
        %v838 = vadd.f32 %v692, %v837
        %v839 = vpop.f32.mrb[0].mxu0
        %v840 = vadd.f32 %v688, %v839
        %v841 = vpop.f32.mrb[0].mxu0
        %v842 = vadd.f32 %v692, %v841
        %843 = vmatprep.mubr.bf16.mxu0 0
        %844 = vmatmul.mubr.bf16.gmra.mrb[0].mxu0 %v645
        %v845 = vpop.f32.mrb[0].mxu0
        %v846 = vadd.f32 %v688, %v845
        %v847 = vpop.f32.mrb[0].mxu0
        %v848 = vadd.f32 %v692, %v847
        %v849 = vpop.f32.mrb[0].mxu0
        %v850 = vadd.f32 %v688, %v849
        %v851 = vpop.f32.mrb[0].mxu0
        %v852 = vadd.f32 %v692, %v851
        %853 = vmatprep.mubr.bf16.mxu0 0
        %854 = vmatmul.mubr.bf16.gmra.mrb[0].mxu0 %v646
        %v855 = vpop.f32.mrb[0].mxu0
        %v856 = vadd.f32 %v688, %v855
        %v857 = vpop.f32.mrb[0].mxu0
        %v858 = vadd.f32 %v692, %v857
        %v859 = vpop.f32.mrb[0].mxu0
        %v860 = vadd.f32 %v688, %v859
        %v861 = vpop.f32.mrb[0].mxu0
        %v862 = vadd.f32 %v692, %v861
        %863 = vmatprep.mubr.bf16.mxu0 0
        %864 = vmatmul.mubr.bf16.gmra.mrb[0].mxu0 %v647
        %v865 = vpop.f32.mrb[0].mxu0
        %v866 = vadd.f32 %v688, %v865
        %v867 = vpop.f32.mrb[0].mxu0
        %v868 = vadd.f32 %v692, %v867
        %v869 = vpop.f32.mrb[0].mxu0
        %v870 = vadd.f32 %v688, %v869
        %v871 = vpop.f32.mrb[0].mxu0
        %v872 = vadd.f32 %v692, %v871
        %873 = vmatprep.mubr.bf16.mxu0 0
        %874 = vmatmul.mubr.bf16.gmra.mrb[0].mxu0 %v648
        %v875 = vpop.f32.mrb[0].mxu0
        %v876 = vadd.f32 %v688, %v875
        %v877 = vpop.f32.mrb[0].mxu0
        %v878 = vadd.f32 %v692, %v877
        %v879 = vpop.f32.mrb[0].mxu0
        %v880 = vadd.f32 %v688, %v879
        %v881 = vpop.f32.mrb[0].mxu0
        %v882 = vadd.f32 %v692, %v881
        %883 = vmatprep.mubr.bf16.mxu0 0
        %884 = vmatmul.mubr.bf16.gmra.mrb[0].mxu0 %v649
        %v885 = vpop.f32.mrb[0].mxu0
        %v886 = vadd.f32 %v688, %v885
        %v887 = vpop.f32.mrb[0].mxu0
        %v888 = vadd.f32 %v692, %v887
        %v889 = vpop.f32.mrb[0].mxu0
        %v890 = vadd.f32 %v688, %v889
        %v891 = vpop.f32.mrb[0].mxu0
        %v892 = vadd.f32 %v692, %v891
        %893 = vmatprep.mubr.bf16.mxu0 0
        %894 = vmatmul.mubr.bf16.gmra.mrb[0].mxu0 %v650
        %v895 = vpop.f32.mrb[0].mxu0
        %v896 = vadd.f32 %v688, %v895
        %v897 = vpop.f32.mrb[0].mxu0
        %v898 = vadd.f32 %v692, %v897
        %v899 = vpop.f32.mrb[0].mxu0
        %v900 = vadd.f32 %v688, %v899
        %v901 = vpop.f32.mrb[0].mxu0
        %v902 = vadd.f32 %v692, %v901
        %903 = vdwg.mxu0
        %v904 = vmax.f32 %v826, 0.0
        %v905 = vmax.f32 %v828, 0.0
        %v906 = vmax.f32 %v830, 0.0
        %v907 = vmax.f32 %v832, 0.0
        %v908 = vmax.f32 %v836, 0.0
        %v909 = vmax.f32 %v838, 0.0
        %v910 = vmax.f32 %v840, 0.0
        %v911 = vmax.f32 %v842, 0.0
        %v912 = vmax.f32 %v846, 0.0
        %v913 = vmax.f32 %v848, 0.0
        %v914 = vmax.f32 %v850, 0.0
        %v915 = vmax.f32 %v852, 0.0
        %v916 = vmax.f32 %v856, 0.0
        %v917 = vmax.f32 %v858, 0.0
        %v918 = vmax.f32 %v860, 0.0
        %v919 = vmax.f32 %v862, 0.0
        %v920 = vmax.f32 %v866, 0.0
        %v921 = vmax.f32 %v868, 0.0
        %v922 = vmax.f32 %v870, 0.0
        %v923 = vmax.f32 %v872, 0.0
        %v924 = vmax.f32 %v876, 0.0
        %v925 = vmax.f32 %v878, 0.0
        %v926 = vmax.f32 %v880, 0.0
        %v927 = vmax.f32 %v882, 0.0
        %v928 = vmax.f32 %v886, 0.0
        %v929 = vmax.f32 %v888, 0.0
        %v930 = vmax.f32 %v890, 0.0
        %v931 = vmax.f32 %v892, 0.0
        %v932 = vmax.f32 %v896, 0.0
        %v933 = vmax.f32 %v898, 0.0
        %v934 = vmax.f32 %v900, 0.0
        %v935 = vmax.f32 %v902, 0.0
        %936 = vst [vmem:[%s310] sm:$0xff] %v904
        %937 = vst [vmem:[%s310 + $0x8] sm:$0xff] %v905
        %938 = vst [vmem:[%s310 + $0x10] sm:$0xff] %v906
        %939 = vst [vmem:[%s310 + $0x18] sm:$0xff] %v907
        %940 = vst [vmem:[%s310 + $0x20] sm:$0xff] %v908
        %941 = vst [vmem:[%s310 + $0x28] sm:$0xff] %v909
        %942 = vst [vmem:[%s310 + $0x30] sm:$0xff] %v910
        %943 = vst [vmem:[%s310 + $0x38] sm:$0xff] %v911
        %944 = vst [vmem:[%s310 + $0x40] sm:$0xff] %v912
        %945 = vst [vmem:[%s310 + $0x48] sm:$0xff] %v913
        %946 = vst [vmem:[%s310 + $0x50] sm:$0xff] %v914
        %947 = vst [vmem:[%s310 + $0x58] sm:$0xff] %v915
        %948 = vst [vmem:[%s310 + $0x60] sm:$0xff] %v916
        %949 = vst [vmem:[%s310 + $0x68] sm:$0xff] %v917
        %950 = vst [vmem:[%s310 + $0x70] sm:$0xff] %v918
        %951 = vst [vmem:[%s310 + $0x78] sm:$0xff] %v919
        %952 = vst [vmem:[%s310 + $0x80] sm:$0xff] %v920
        %953 = vst [vmem:[%s310 + $0x88] sm:$0xff] %v921
        %954 = vst [vmem:[%s310 + $0x90] sm:$0xff] %v922
        %955 = vst [vmem:[%s310 + $0x98] sm:$0xff] %v923
        %956 = vst [vmem:[%s310 + $0xa0] sm:$0xff] %v924
        %957 = vst [vmem:[%s310 + $0xa8] sm:$0xff] %v925
        %958 = vst [vmem:[%s310 + $0xb0] sm:$0xff] %v926
        %959 = vst [vmem:[%s310 + $0xb8] sm:$0xff] %v927
        %960 = vst [vmem:[%s310 + $0xc0] sm:$0xff] %v928
        %961 = vst [vmem:[%s310 + $0xc8] sm:$0xff] %v929
        %962 = vst [vmem:[%s310 + $0xd0] sm:$0xff] %v930
        %963 = vst [vmem:[%s310 + $0xd8] sm:$0xff] %v931
        %964 = vst [vmem:[%s310 + $0xe0] sm:$0xff] %v932
        %965 = vst [vmem:[%s310 + $0xe8] sm:$0xff] %v933
        %966 = vst [vmem:[%s310 + $0xf0] sm:$0xff] %v934
        %967 = vst [vmem:[%s310 + $0xf8] sm:$0xff] %v935
        %s968 = sand.u32 %s146, 1
        %s969 = scalar_lea.sflag [#allocation4], %s968
        %s970 = sand.u32 %s146, 1
        %s971 = smul.addr %s970, 128
        %s972 = scalar_lea.vmem [#allocation8], %s971
        %s973 = sand.u32 %s172, 1
        %s974 = scalar_lea.sflag [#allocation10], %s973
        %s975 = sand.u32 %s172, 1
        %s976 = smul.addr %s975, 256
        %s977 = scalar_lea.vmem [#allocation9], %s976
        // Predicated region
        $region53: #{tpu_custom_call.1} parent=39 // pred_check
          %p978 = pneg %p156
        $region54: #{tpu_custom_call.1} parent=39 // pred_check_branch
          %980 = sbr.rel (%p978) target = $region56
        $region55: #{tpu_custom_call.1} parent=39 // pred_region
          %s981 = smul.u32 16, %s28
          %s983 = ssub.s32 2048, 2048
          %984 = vsyncadd %s969, %s983
          %s985 = smul.addr %s981, 128
          %s986 = scalar_lea.hbm %s5, %s985
          %s987 = sshll.u32 %s972, 4
          %s988 = int_to_ptr.vmem [resolvable:$true] %s987
          %993 = dma.vmem_to_hbm [thread:$0]  %s988, 2048, %s986, %s969, 128, 128, 8
        $region56: #{tpu_custom_call.1} parent=39 // pred_fallthru
          _
        // Predicated region
        $region57: #{tpu_custom_call.1} parent=39 // pred_check
          %p994 = pneg %p182
        $region58: #{tpu_custom_call.1} parent=39 // pred_check_branch
          %996 = sbr.rel (%p994) target = $region60
        $region59: #{tpu_custom_call.1} parent=39 // pred_region
          %s997 = smul.u32 16, %s28
          %s999 = ssub.s32 4096, 4096
          %1000 = vsyncadd %s974, %s999
          %s1001 = smul.addr %s997, 2
          %s1002 = smul.addr %s1001, 128
          %s1003 = scalar_lea.hbm %s6, %s1002
          %s1004 = sshll.u32 %s977, 4
          %s1005 = int_to_ptr.vmem [resolvable:$true] %s1004
          %1010 = dma.vmem_to_hbm [thread:$0]  %s1005, 4096, %s1003, %s974, 256, 256, 16
        $region60: #{tpu_custom_call.1} parent=39 // pred_fallthru
          _
      $region40: #{tpu_custom_call.1} parent=5 // pred_fallthru
        _
      %p1011 = scmp.le.s32.totalorder 2, %s23
      // Predicated region
      $region61: #{tpu_custom_call.1} parent=5 // pred_check
        %p1012 = pneg %p1011
      $region62: #{tpu_custom_call.1} parent=5 // pred_check_branch
        %1014 = sbr.rel (%p1012) target = $region64
      $region63: #{tpu_custom_call.1} parent=5 // pred_region
        %s1015 = ssub.s32 %s23, 2
        // Predicated region
        $region65: #{tpu_custom_call.1} parent=63 // pred_check
          %p1016 = pneg %p162
        $region66: #{tpu_custom_call.1} parent=63 // pred_check_branch
          %1018 = sbr.rel (%p1016) target = $region68
        $region67: #{tpu_custom_call.1} parent=63 // pred_region
          %s1019 = sand.u32 %s147, 1
          %s1020 = scalar_lea.sflag [#allocation4], %s1019
          %s1021 = sand.u32 %s147, 1
          %s1022 = smul.addr %s1021, 128
          %s1023 = scalar_lea.vmem [#allocation8], %s1022
          %1024 = dma.done %s1020, 2048
        $region68: #{tpu_custom_call.1} parent=63 // pred_fallthru
          _
        // Predicated region
        $region69: #{tpu_custom_call.1} parent=63 // pred_check
          %p1025 = pneg %p188
        $region70: #{tpu_custom_call.1} parent=63 // pred_check_branch
          %1027 = sbr.rel (%p1025) target = $region72
        $region71: #{tpu_custom_call.1} parent=63 // pred_region
          %s1028 = sand.u32 %s173, 1
          %s1029 = scalar_lea.sflag [#allocation10], %s1028
          %s1030 = sand.u32 %s173, 1
          %s1031 = smul.addr %s1030, 256
          %s1032 = scalar_lea.vmem [#allocation9], %s1031
          %1033 = dma.done %s1029, 4096
        $region72: #{tpu_custom_call.1} parent=63 // pred_fallthru
          _
      $region64: #{tpu_custom_call.1} parent=5 // pred_fallthru
        _
    $region6: #{tpu_custom_call.1} parent=1 // loop_footer
      %s27 = sadd.s32 1, %s23
    $region7: #{tpu_custom_call.1} parent=1 // loop_footer_branch
      %22 = sbr.rel target = $region3
    $region8: #{tpu_custom_call.1} parent=1 // loop_exit
      _
    %1034 = vsyncpa [#allocation3], 1
    %s1035 = scalar_lea.sflag [#allocation3], 1
    %1036 = vsyncpa %s1035, 1
    %1037 = vsyncpa [#allocation6], 1
    %1038 = vsyncpa [#allocation4], 1
    %s1039 = scalar_lea.sflag [#allocation4], 1
    %1040 = vsyncpa %s1039, 1
    %1041 = vsyncpa [#allocation10], 1
    %s1042 = scalar_lea.sflag [#allocation10], 1
    %1043 = vsyncpa %s1042, 1

</llo_original>
